<compile_context>
chip_gen: v5e
topology: v5e:2x2
jax: 0.10.0
libtpu: 0.0.40
codegen_flags: <defaults>
</compile_context>

<pallas_src>
import math

import numpy as np
import jax
import jax.numpy as jnp
from jax import lax
from jax.experimental import pallas as pl
from jax.experimental.pallas import tpu as pltpu

# ----------------------------------------------------------------------------
# Config — mirrors CNNandAttentionModel.__init__ arithmetic (small shapes).
# ----------------------------------------------------------------------------
BATCH = 2
NUM_SEQUENCE = 16          # numSequence (audio time steps)
NUM_AUDIO_FEATURE = 8      # numAudioFeature
NUM_META_FEATURE = 6       # numMetaDataFeature
NUM_TARGET = 5             # numTarget
NUM_CNN_LAYER = 2
NUM_DECODER_LAYER = 1
KSIZE = 3                  # kernel_size
STRIDE = 2                 # numStride

# The in-kernel attention vectorization below is specialised to B == 2
# (batch_first=False => attention mixes the B batch rows per conv position;
# do NOT pad/stack the batch — it would change the numerics of the real rows).
assert BATCH == 2

# featureMapList = [C, *linspace(2C, 0.5C, numCNNLayer)] -> [8, 16, 4]
FEATURE_MAPS = [NUM_AUDIO_FEATURE] + [
    int(v) for v in np.linspace(NUM_AUDIO_FEATURE * 2, NUM_AUDIO_FEATURE * 0.5, NUM_CNN_LAYER)
]
EMBED = FEATURE_MAPS[-1]   # MultiheadAttention embed_dim (4)

# Conv output lengths: L -> (L - K)//S + 1 per layer -> [7, 3]
CONV_LENS = []
_l = NUM_SEQUENCE
for _ in range(NUM_CNN_LAYER):
    _l = (_l - KSIZE) // STRIDE + 1
    CONV_LENS.append(_l)
CNN_OUT_LEN = CONV_LENS[-1]                   # 3

RNN_OUT = EMBED * CNN_OUT_LEN                 # flattened attention width (12)
DEC_IN = RNN_OUT + NUM_META_FEATURE           # 18 (metaDataFeatureList[-1] == M)
# nodesList = reversed(linspace(numTarget, DEC_IN, numDecoderLayer + 2)) -> [18, 11, 5]
NODES = [int(v // 1) for v in np.linspace(NUM_TARGET, DEC_IN, NUM_DECODER_LAYER + 2)[::-1]]

# ----------------------------------------------------------------------------
# Packed-parameter layout: every (expanded / folded) parameter lives at a
# static, 8-row-aligned offset inside one (PACK_ROWS, 128) f32 slab.
# ----------------------------------------------------------------------------
PARAM_SHAPES = {
    # conv layers expanded to dense Toeplitz GEMM weights on (B, L*C) activations
    "c1w": (NUM_SEQUENCE * FEATURE_MAPS[0], CONV_LENS[0] * FEATURE_MAPS[1]),   # (128, 112)
    "c1b": (1, CONV_LENS[0] * FEATURE_MAPS[1]),
    "c2w": (CONV_LENS[0] * FEATURE_MAPS[1], CONV_LENS[1] * FEATURE_MAPS[2]),   # (112, 12)
    "c2b": (1, CONV_LENS[1] * FEATURE_MAPS[2]),
    # fused Q|K|V projection (block-diagonal over conv positions, Q pre-scaled)
    "wqkv": (RNN_OUT, 3 * RNN_OUT),                                            # (12, 36)
    "bqkv": (1, 3 * RNN_OUT),
    # constant 0/1 matrices: per-position segment reduce & broadcast expand
    "seg": (RNN_OUT, CNN_OUT_LEN),                                             # (12, 3)
    "bexp": (CNN_OUT_LEN, RNN_OUT),                                            # (3, 12)
    # out_proj + decoder linears folded on the host
    "wda": (RNN_OUT, NUM_TARGET),                                              # (12, 5)
    "wdm": (NUM_META_FEATURE, NUM_TARGET),                                     # (6, 5)
    "bd": (1, NUM_TARGET),
}
PACK_COLS = 128


def _round8(n):
    return ((n + 7) // 8) * 8


PARAM_OFFSETS = {}
_row = 0
for _name, _shp in PARAM_SHAPES.items():
    PARAM_OFFSETS[_name] = _row
    _row += _round8(_shp[0])
PACK_ROWS = _row


# ----------------------------------------------------------------------------
# Pallas kernel: whole forward pass, all operands VMEM-resident (no grid).
# ----------------------------------------------------------------------------
def _mm(a, w):
    """2-D matmul a @ w with f32 accumulation (MXU)."""
    return lax.dot_general(a, w, (((1,), (0,)), ((), ())),
                           preferred_element_type=jnp.float32)


def cnn_attention_kernel(audio_ref, meta_ref, params_ref, out_ref):
    # Static, 8-row-aligned views into the single packed parameter slab.
    def P(name):
        off = PARAM_OFFSETS[name]
        r, c = PARAM_SHAPES[name]
        return params_ref[pl.ds(off, r), pl.ds(0, c)]

    # ---- CNN stack: (Conv1d -> Tanh) per layer, one GEMM per layer on the
    # channels-last-flattened activation (B, L*C).  Toeplitz weights were
    # pre-expanded on the host; numerically identical to im2col matmuls.
    x = audio_ref[...]                                         # (2, 128)
    h = jnp.tanh(_mm(x, P("c1w")) + P("c1b"))                  # (2, 112)
    h = jnp.tanh(_mm(h, P("c2w")) + P("c2b"))                  # (2, 12)  = (B, L*E)

    # ---- Fused Q/K/V projection: ONE GEMM (scale 1/sqrt(E) folded into Q).
    qkv = _mm(h, P("wqkv")) + P("bqkv")                        # (2, 36)
    q = qkv[:, 0:RNN_OUT]                                      # pre-scaled
    k = qkv[:, RNN_OUT:2 * RNN_OUT]
    v = qkv[:, 2 * RNN_OUT:3 * RNN_OUT]

    # ---- Vectorized single-head attention with the PyTorch batch_first=False
    # quirk: the (B, L, E) tensor is read as (seq=B, batch=L, embed=E), i.e.
    # attention mixes the B batch rows independently for each conv position.
    # Pairwise products across all L positions at once (full 12-lane VPU ops);
    # rows of `prod` are (b0,c0), (b1,c0), (b0,c1), (b1,c1).
    prod = jnp.concatenate([q * k[0:1], q * k[1:2]], axis=0)   # (4, 12)
    # One MXU push against the constant 0/1 segment matrix reduces each
    # 4-lane position group -> raw scores, columns = positions.
    scores = _mm(prod, P("seg"))                               # (4, 3)

    # Softmax over the key index c (rows {0,1}=c0 vs {2,3}=c1) per (b, pos).
    top = scores[0:2]                                          # c = 0
    bot = scores[2:4]                                          # c = 1
    m = jnp.maximum(top, bot)
    e_top = jnp.exp(top - m)
    e_bot = jnp.exp(bot - m)
    denom = e_top + e_bot
    attn = jnp.concatenate([e_top / denom, e_bot / denom], axis=0)   # (4, 3)

    # Expand per-position weights back to the lane layout (one tiny push),
    # then form the attention output as a VPU weighted sum of V's rows.
    w_exp = _mm(attn, P("bexp"))                               # (4, 12)
    attn_out = w_exp[0:2] * v[0:1] + w_exp[2:4] * v[1:2]       # (2, 12)

    # ---- out_proj + decoder Linears folded on host (no nonlinearity between
    # them); metadata passes through unchanged (metaDataModel is dead code in
    # the PyTorch forward: `'self.metaDataModel' in globals()` is always False).
    logits = _mm(attn_out, P("wda")) + _mm(meta_ref[...], P("wdm")) + P("bd")  # (2, 5)

    # ---- Softmax(dim=1), exact divide so row-sum == 1 holds at 1e-5.
    logits = logits - jnp.max(logits, axis=1, keepdims=True)
    e = jnp.exp(logits)
    out_ref[...] = e / jnp.sum(e, axis=1, keepdims=True)


# ----------------------------------------------------------------------------
# Host wrapper.
# ----------------------------------------------------------------------------
@jax.jit
def forward(audio, meta, packed_params):
    # (B, T, C) -> (B, T*C): channels-last flatten (layout plumbing, done by XLA).
    audio_flat = audio.reshape(audio.shape[0], -1)
    vmem = lambda: pl.BlockSpec(memory_space=pltpu.MemorySpace.VMEM)
    return pl.pallas_call(
        cnn_attention_kernel,
        out_shape=jax.ShapeDtypeStruct((audio.shape[0], NUM_TARGET), jnp.float32),
        in_specs=[vmem(), vmem(), vmem()],
        out_specs=vmem(),
    )(audio_flat, meta, packed_params)


# ----------------------------------------------------------------------------
# Parameter construction: PyTorch-style uniform init, then host-side lowering
# to GEMM form (Toeplitz conv, block-diag attention, folded decoder) and
# packing into one (PACK_ROWS, 128) f32 slab (single entry DMA).
# ----------------------------------------------------------------------------
def build_params(key):
    def uni(k, fan_in, shape):
        b = 1.0 / math.sqrt(fan_in)
        return np.asarray(jax.random.uniform(k, shape, jnp.float32, -b, b))

    keys = iter(jax.random.split(key, 32))
    raw = {}
    # Conv layers: weight (K*Cin, Cout), row index = k*Cin + cin; bias (1, Cout)
    for i in range(NUM_CNN_LAYER):
        cin, cout = FEATURE_MAPS[i], FEATURE_MAPS[i + 1]
        fan_in = cin * KSIZE
        raw[f"c{i+1}w"] = uni(next(keys), fan_in, (KSIZE * cin, cout))
        raw[f"c{i+1}b"] = uni(next(keys), fan_in, (1, cout))
    # MultiheadAttention (single head): q/k/v/out projections, (in, out) layout
    for nm in ("q", "k", "v", "o"):
        raw[f"w{nm}"] = uni(next(keys), EMBED, (EMBED, EMBED))
        raw[f"b{nm}"] = uni(next(keys), EMBED, (1, EMBED))
    # Decoder linears
    for i in range(len(NODES) - 1):
        fin, fout = NODES[i], NODES[i + 1]
        raw[f"d{i+1}w"] = uni(next(keys), fin, (fin, fout))
        raw[f"d{i+1}b"] = uni(next(keys), fin, (1, fout))

    expanded = {}

    # ---- expand convs to dense (L_in*Cin, L_out*Cout) Toeplitz GEMM weights.
    lin = NUM_SEQUENCE
    for i in range(NUM_CNN_LAYER):
        cin, cout = FEATURE_MAPS[i], FEATURE_MAPS[i + 1]
        lout = CONV_LENS[i]
        w, b = raw[f"c{i+1}w"], raw[f"c{i+1}b"]
        big = np.zeros((lin * cin, lout * cout), np.float32)
        for l in range(lout):
            for kk in range(KSIZE):
                t = l * STRIDE + kk
                big[t * cin:(t + 1) * cin, l * cout:(l + 1) * cout] = w[kk * cin:(kk + 1) * cin, :]
        expanded[f"c{i+1}w"] = big
        expanded[f"c{i+1}b"] = np.tile(b, (1, lout))
        lin = lout

    # ---- block-diagonal attention projections; fuse Q|K|V; fold score scale.
    def blockdiag(w):
        big = np.zeros((RNN_OUT, RNN_OUT), np.float32)
        for l in range(CNN_OUT_LEN):
            big[l * EMBED:(l + 1) * EMBED, l * EMBED:(l + 1) * EMBED] = w
        return big

    scale = np.float32(1.0 / math.sqrt(EMBED))
    wq_bd = blockdiag(raw["wq"]) * scale
    wk_bd = blockdiag(raw["wk"])
    wv_bd = blockdiag(raw["wv"])
    bq_t = np.tile(raw["bq"], (1, CNN_OUT_LEN)) * scale
    bk_t = np.tile(raw["bk"], (1, CNN_OUT_LEN))
    bv_t = np.tile(raw["bv"], (1, CNN_OUT_LEN))
    expanded["wqkv"] = np.concatenate([wq_bd, wk_bd, wv_bd], axis=1)
    expanded["bqkv"] = np.concatenate([bq_t, bk_t, bv_t], axis=1)

    # ---- constant segment-reduce / broadcast-expand matrices.
    seg = np.zeros((RNN_OUT, CNN_OUT_LEN), np.float32)
    for n in range(CNN_OUT_LEN):
        seg[n * EMBED:(n + 1) * EMBED, n] = 1.0
    expanded["seg"] = seg
    expanded["bexp"] = np.ascontiguousarray(seg.T)

    # ---- fold out_proj + decoder linears (exact algebraic rewrite; only the
    # f32 rounding order changes).
    wo_bd = blockdiag(raw["wo"])
    bo_t = np.tile(raw["bo"], (1, CNN_OUT_LEN))
    d1w, d1b = raw["d1w"], raw["d1b"]
    d2w, d2b = raw["d2w"], raw["d2b"]
    expanded["wda"] = wo_bd @ d1w[:RNN_OUT, :] @ d2w
    expanded["wdm"] = d1w[RNN_OUT:, :] @ d2w
    expanded["bd"] = (bo_t @ d1w[:RNN_OUT, :] + d1b) @ d2w + d2b

    # ---- pack into one slab at static 8-row-aligned offsets.
    packed = np.zeros((PACK_ROWS, PACK_COLS), np.float32)
    for name, (r, c) in PARAM_SHAPES.items():
        off = PARAM_OFFSETS[name]
        packed[off:off + r, :c] = expanded[name]
    return jnp.asarray(packed), raw


# ----------------------------------------------------------------------------
# Pure-numpy reference of the PyTorch forward (un-fused, per-position loop)
# used to validate the Toeplitz expansion, Q/K/V fusion and decoder folding.
# ----------------------------------------------------------------------------
def reference_forward(audio, meta, raw):
    x = np.asarray(audio, np.float32)                          # (B, T, Cin)
    B = x.shape[0]
    for i in range(NUM_CNN_LAYER):
        cin, cout = FEATURE_MAPS[i], FEATURE_MAPS[i + 1]
        lout = CONV_LENS[i]
        w, b = raw[f"c{i+1}w"], raw[f"c{i+1}b"]
        y = np.zeros((B, lout, cout), np.float32)
        for l in range(lout):
            win = x[:, l * STRIDE:l * STRIDE + KSIZE, :].reshape(B, KSIZE * cin)
            y[:, l, :] = win @ w + b
        x = np.tanh(y)
    h = x                                                      # (B, L, E)
    scale = 1.0 / math.sqrt(EMBED)
    attn_out = np.zeros_like(h)
    for n in range(CNN_OUT_LEN):                               # batch_first=False quirk
        hn = h[:, n, :]
        q = hn @ raw["wq"] + raw["bq"]
        k = hn @ raw["wk"] + raw["bk"]
        v = hn @ raw["wv"] + raw["bv"]
        s = (q @ k.T) * scale
        s = s - s.max(axis=-1, keepdims=True)
        p = np.exp(s)
        p = p / p.sum(axis=-1, keepdims=True)
        attn_out[:, n, :] = (p @ v) @ raw["wo"] + raw["bo"]
    cat = np.concatenate([attn_out.reshape(B, -1), np.asarray(meta, np.float32)], axis=1)
    h1 = cat @ raw["d1w"] + raw["d1b"]
    y = h1 @ raw["d2w"] + raw["d2b"]
    y = y - y.max(axis=1, keepdims=True)
    e = np.exp(y)
    return e / e.sum(axis=1, keepdims=True)


if __name__ == "__main__":
    key = jax.random.PRNGKey(0)
    k_audio, k_meta, k_params = jax.random.split(key, 3)

    # audioData: (B, numSequence, numAudioFeature); metaData: (B, numMetaDataFeature)
    audio = jax.random.normal(k_audio, (BATCH, NUM_SEQUENCE, NUM_AUDIO_FEATURE), jnp.float32)
    meta = jax.random.normal(k_meta, (BATCH, NUM_META_FEATURE), jnp.float32)
    params, raw = build_params(k_params)

    out = jax.block_until_ready(forward(audio, meta, params))

    assert out.shape == (BATCH, NUM_TARGET), out.shape
    assert bool(jnp.all(jnp.isfinite(out)))
    assert bool(jnp.allclose(jnp.sum(out, axis=1), 1.0, atol=1e-5))   # softmax rows

    ref = reference_forward(np.asarray(audio), np.asarray(meta), raw)
    assert bool(jnp.allclose(out, jnp.asarray(ref), atol=1e-3, rtol=1e-3)), (
        np.max(np.abs(np.asarray(out) - ref)))

    print("KERNEL_OK")
</pallas_src>

<mosaic_0001>
module attributes {stable_mosaic.version = 11 : i64} {
  func.func @cnn_attention_kernel(%arg0: memref<2x128xf32, #tpu.memory_space<vmem>>, %arg1: memref<2x6xf32, #tpu.memory_space<vmem>>, %arg2: memref<336x128xf32, #tpu.memory_space<vmem>>, %arg3: memref<2x5xf32, #tpu.memory_space<vmem>>) attributes {dimension_semantics = [], scalar_prefetch = 0 : i64, scratch_operands = 0 : i64, tpu.core_type = #tpu.core_type<tc>} {
    %c0 = arith.constant 0 : index
    %c0_0 = arith.constant 0 : index
    %0 = vector.load %arg0[%c0, %c0_0] : memref<2x128xf32, #tpu.memory_space<vmem>>, vector<2x128xf32>
    %c0_1 = arith.constant 0 : index
    %c0_2 = arith.constant 0 : index
    %1 = vector.load %arg2[%c0_1, %c0_2] : memref<336x128xf32, #tpu.memory_space<vmem>>, vector<128x112xf32>
    %cst = arith.constant dense<0.000000e+00> : vector<2x112xf32>
    %2 = tpu.matmul %0, %1, %cst {dimension_numbers = #tpu.dot_dimension_numbers<[1], [0], [0], [1], [0, 0, 1, 1], [], []>} : vector<2x128xf32>, vector<128x112xf32>, vector<2x112xf32> -> vector<2x112xf32>
    %c128 = arith.constant 128 : index
    %c0_3 = arith.constant 0 : index
    %3 = vector.load %arg2[%c128, %c0_3] : memref<336x128xf32, #tpu.memory_space<vmem>>, vector<1x112xf32>
    %4 = vector.broadcast %3 : vector<1x112xf32> to vector<2x112xf32>
    %5 = arith.addf %2, %4 : vector<2x112xf32>
    %6 = math.tanh %5 : vector<2x112xf32>
    %c136 = arith.constant 136 : index
    %c0_4 = arith.constant 0 : index
    %7 = vector.load %arg2[%c136, %c0_4] : memref<336x128xf32, #tpu.memory_space<vmem>>, vector<112x12xf32>
    %cst_5 = arith.constant dense<0.000000e+00> : vector<2x12xf32>
    %8 = tpu.matmul %6, %7, %cst_5 {dimension_numbers = #tpu.dot_dimension_numbers<[1], [0], [0], [1], [0, 0, 1, 1], [], []>} : vector<2x112xf32>, vector<112x12xf32>, vector<2x12xf32> -> vector<2x12xf32>
    %c248 = arith.constant 248 : index
    %c0_6 = arith.constant 0 : index
    %9 = vector.load %arg2[%c248, %c0_6] : memref<336x128xf32, #tpu.memory_space<vmem>>, vector<1x12xf32>
    %10 = vector.broadcast %9 : vector<1x12xf32> to vector<2x12xf32>
    %11 = arith.addf %8, %10 : vector<2x12xf32>
    %12 = math.tanh %11 : vector<2x12xf32>
    %c256 = arith.constant 256 : index
    %c0_7 = arith.constant 0 : index
    %13 = vector.load %arg2[%c256, %c0_7] : memref<336x128xf32, #tpu.memory_space<vmem>>, vector<12x36xf32>
    %cst_8 = arith.constant dense<0.000000e+00> : vector<2x36xf32>
    %14 = tpu.matmul %12, %13, %cst_8 {dimension_numbers = #tpu.dot_dimension_numbers<[1], [0], [0], [1], [0, 0, 1, 1], [], []>} : vector<2x12xf32>, vector<12x36xf32>, vector<2x36xf32> -> vector<2x36xf32>
    %c272 = arith.constant 272 : index
    %c0_9 = arith.constant 0 : index
    %15 = vector.load %arg2[%c272, %c0_9] : memref<336x128xf32, #tpu.memory_space<vmem>>, vector<1x36xf32>
    %16 = vector.broadcast %15 : vector<1x36xf32> to vector<2x36xf32>
    %17 = arith.addf %14, %16 : vector<2x36xf32>
    %18 = vector.extract_strided_slice %17 {offsets = [0, 0], sizes = [2, 12], strides = [1, 1]} : vector<2x36xf32> to vector<2x12xf32>
    %19 = vector.extract_strided_slice %17 {offsets = [0, 12], sizes = [2, 12], strides = [1, 1]} : vector<2x36xf32> to vector<2x12xf32>
    %20 = vector.extract_strided_slice %17 {offsets = [0, 24], sizes = [2, 12], strides = [1, 1]} : vector<2x36xf32> to vector<2x12xf32>
    %21 = vector.extract_strided_slice %19 {offsets = [0, 0], sizes = [1, 12], strides = [1, 1]} : vector<2x12xf32> to vector<1x12xf32>
    %22 = vector.broadcast %21 : vector<1x12xf32> to vector<2x12xf32>
    %23 = arith.mulf %18, %22 : vector<2x12xf32>
    %24 = vector.extract_strided_slice %19 {offsets = [1, 0], sizes = [1, 12], strides = [1, 1]} : vector<2x12xf32> to vector<1x12xf32>
    %25 = vector.broadcast %24 : vector<1x12xf32> to vector<2x12xf32>
    %26 = arith.mulf %18, %25 : vector<2x12xf32>
    %27 = tpu.concatenate %23, %26 in 0 : vector<2x12xf32>, vector<2x12xf32> -> vector<4x12xf32>
    %c280 = arith.constant 280 : index
    %c0_10 = arith.constant 0 : index
    %28 = vector.load %arg2[%c280, %c0_10] : memref<336x128xf32, #tpu.memory_space<vmem>>, vector<12x3xf32>
    %cst_11 = arith.constant dense<0.000000e+00> : vector<4x3xf32>
    %29 = tpu.matmul %27, %28, %cst_11 {dimension_numbers = #tpu.dot_dimension_numbers<[1], [0], [0], [1], [0, 0, 1, 1], [], []>} : vector<4x12xf32>, vector<12x3xf32>, vector<4x3xf32> -> vector<4x3xf32>
    %30 = vector.extract_strided_slice %29 {offsets = [0, 0], sizes = [2, 3], strides = [1, 1]} : vector<4x3xf32> to vector<2x3xf32>
    %31 = vector.extract_strided_slice %29 {offsets = [2, 0], sizes = [2, 3], strides = [1, 1]} : vector<4x3xf32> to vector<2x3xf32>
    %32 = arith.maximumf %30, %31 : vector<2x3xf32>
    %33 = arith.subf %30, %32 : vector<2x3xf32>
    %34 = math.exp %33 : vector<2x3xf32>
    %35 = arith.subf %31, %32 : vector<2x3xf32>
    %36 = math.exp %35 : vector<2x3xf32>
    %37 = arith.addf %34, %36 : vector<2x3xf32>
    %38 = arith.divf %34, %37 : vector<2x3xf32>
    %39 = arith.divf %36, %37 : vector<2x3xf32>
    %40 = tpu.concatenate %38, %39 in 0 : vector<2x3xf32>, vector<2x3xf32> -> vector<4x3xf32>
    %c296 = arith.constant 296 : index
    %c0_12 = arith.constant 0 : index
    %41 = vector.load %arg2[%c296, %c0_12] : memref<336x128xf32, #tpu.memory_space<vmem>>, vector<3x12xf32>
    %cst_13 = arith.constant dense<0.000000e+00> : vector<4x12xf32>
    %42 = tpu.matmul %40, %41, %cst_13 {dimension_numbers = #tpu.dot_dimension_numbers<[1], [0], [0], [1], [0, 0, 1, 1], [], []>} : vector<4x3xf32>, vector<3x12xf32>, vector<4x12xf32> -> vector<4x12xf32>
    %43 = vector.extract_strided_slice %42 {offsets = [0, 0], sizes = [2, 12], strides = [1, 1]} : vector<4x12xf32> to vector<2x12xf32>
    %44 = vector.extract_strided_slice %20 {offsets = [0, 0], sizes = [1, 12], strides = [1, 1]} : vector<2x12xf32> to vector<1x12xf32>
    %45 = vector.broadcast %44 : vector<1x12xf32> to vector<2x12xf32>
    %46 = arith.mulf %43, %45 : vector<2x12xf32>
    %47 = vector.extract_strided_slice %42 {offsets = [2, 0], sizes = [2, 12], strides = [1, 1]} : vector<4x12xf32> to vector<2x12xf32>
    %48 = vector.extract_strided_slice %20 {offsets = [1, 0], sizes = [1, 12], strides = [1, 1]} : vector<2x12xf32> to vector<1x12xf32>
    %49 = vector.broadcast %48 : vector<1x12xf32> to vector<2x12xf32>
    %50 = arith.mulf %47, %49 : vector<2x12xf32>
    %51 = arith.addf %46, %50 : vector<2x12xf32>
    %c304 = arith.constant 304 : index
    %c0_14 = arith.constant 0 : index
    %52 = vector.load %arg2[%c304, %c0_14] : memref<336x128xf32, #tpu.memory_space<vmem>>, vector<12x5xf32>
    %cst_15 = arith.constant dense<0.000000e+00> : vector<2x5xf32>
    %53 = tpu.matmul %51, %52, %cst_15 {dimension_numbers = #tpu.dot_dimension_numbers<[1], [0], [0], [1], [0, 0, 1, 1], [], []>} : vector<2x12xf32>, vector<12x5xf32>, vector<2x5xf32> -> vector<2x5xf32>
    %c0_16 = arith.constant 0 : index
    %c0_17 = arith.constant 0 : index
    %54 = vector.load %arg1[%c0_16, %c0_17] : memref<2x6xf32, #tpu.memory_space<vmem>>, vector<2x6xf32>
    %c320 = arith.constant 320 : index
    %c0_18 = arith.constant 0 : index
    %55 = vector.load %arg2[%c320, %c0_18] : memref<336x128xf32, #tpu.memory_space<vmem>>, vector<6x5xf32>
    %cst_19 = arith.constant dense<0.000000e+00> : vector<2x5xf32>
    %56 = tpu.matmul %54, %55, %cst_19 {dimension_numbers = #tpu.dot_dimension_numbers<[1], [0], [0], [1], [0, 0, 1, 1], [], []>} : vector<2x6xf32>, vector<6x5xf32>, vector<2x5xf32> -> vector<2x5xf32>
    %57 = arith.addf %53, %56 : vector<2x5xf32>
    %c328 = arith.constant 328 : index
    %c0_20 = arith.constant 0 : index
    %58 = vector.load %arg2[%c328, %c0_20] : memref<336x128xf32, #tpu.memory_space<vmem>>, vector<1x5xf32>
    %59 = vector.broadcast %58 : vector<1x5xf32> to vector<2x5xf32>
    %60 = arith.addf %57, %59 : vector<2x5xf32>
    %cst_21 = arith.constant dense<0xFF800000> : vector<2xf32>
    %61 = vector.multi_reduction <maximumf>, %60, %cst_21 [1] : vector<2x5xf32> to vector<2xf32>
    %62 = vector.shape_cast %61 : vector<2xf32> to vector<2x1xf32>
    %63 = vector.broadcast %62 : vector<2x1xf32> to vector<2x5xf32>
    %64 = arith.subf %60, %63 : vector<2x5xf32>
    %65 = math.exp %64 : vector<2x5xf32>
    %cst_22 = arith.constant dense<0.000000e+00> : vector<2xf32>
    %66 = vector.multi_reduction <add>, %65, %cst_22 [1] : vector<2x5xf32> to vector<2xf32>
    %67 = vector.shape_cast %66 : vector<2xf32> to vector<2x1xf32>
    %68 = vector.broadcast %67 : vector<2x1xf32> to vector<2x5xf32>
    %69 = arith.divf %65, %68 : vector<2x5xf32>
    %c0_23 = arith.constant 0 : index
    %c0_24 = arith.constant 0 : index
    %70 = vector.load %arg3[%c0_23, %c0_24] : memref<2x5xf32, #tpu.memory_space<vmem>>, vector<2x5xf32>
    tpu.vector_store %arg3[%c0_23, %c0_24], %69 {strides = array<i32>} : memref<2x5xf32, #tpu.memory_space<vmem>>, vector<2x5xf32>,
    return
  }
}

</mosaic_0001>

<llo_original>
// kernel: forward.1
$region0: #{forward.1}
  #allocation0 [shape = 'u32[]', space=smem, size = 0x4, offset = 0x4, fixed_abs, tag = 'smem constant byte address 0x4 - core index']
  #allocation1 [shape = 'u32[72,128]{1,0:T(1,128)}', space=vmem, size = 0x9000, scoped, tag = 'internal scratch']
  %s0 = inlined_call_operand.vmem [shape: f32[2,128], index: 0, kind: input, shape index: {}]
  %s1 = inlined_call_operand.vmem [shape: f32[2,6], index: 1, kind: input, shape index: {}]
  %s2 = inlined_call_operand.hbm [shape: f32[336,128], index: 2, kind: input, shape index: {}]
  %s3 = inlined_call_operand.hbm [shape: f32[2,5], index: 3, kind: output, shape index: {}]
  %s4 = sld [smem:[#allocation0]]
  $region26: #{forward.1} parent=0
    _
  %s6 = ssub.s32 1, %s4
  %s7 = scalar_select 0, %s6, %s4
  $region1: #{forward.1} parent=0
    #allocation2 [shape = 'u8[172032]{0}', space=vmem, size = 0x2a000, scoped, tag = 'input window, operand 2, single buffered']
    #allocation3 [shape = 's32[1]{0}', space=sflag, size = 0x4, scoped, tag = 'scoped memory for forward.1']
    #allocation4 [shape = 's32[1]{0}', space=sflag, size = 0x4, scoped, tag = 'scoped memory for forward.1']
    #allocation5 [shape = 'u8[1024]{0}', space=vmem, size = 0x400, scoped, tag = 'output window, operand 0, single buffered']
    %8 = vsyncpa [#allocation3], 0
    %9 = vsyncpa [#allocation4], 0
    // Predicated region
    $region2: #{forward.1} parent=1 // pred_check
      _
    $region3: #{forward.1} parent=1 // pred_check_branch
      %11 = sbr.rel (0) target = $region5
    $region4: #{forward.1} parent=1 // pred_region
      _
    $region5: #{forward.1} parent=1 // pred_fallthru
      _
    // Predicated region
    $region6: #{forward.1} parent=1 // pred_check
      _
    $region7: #{forward.1} parent=1 // pred_check_branch
      %13 = sbr.rel (0) target = $region9
    $region8: #{forward.1} parent=1 // pred_region
      _
    $region9: #{forward.1} parent=1 // pred_fallthru
      _
    // Predicated region
    $region10: #{forward.1} parent=1 // pred_check
      _
    $region11: #{forward.1} parent=1 // pred_check_branch
      %15 = sbr.rel (0) target = $region13
    $region12: #{forward.1} parent=1 // pred_region
      %17 = vsyncadd [#allocation3], 0
      %s18 = sshll.u32 %s2, 4
      %s19 = int_to_ptr.hbm [resolvable:$true] %s18
      %s20 = sshll.u32 [#allocation2], 4
      %s21 = int_to_ptr.vmem [resolvable:$true] %s20
      %26 = dma.hbm_to_vmem [thread:$0]  %s19, 5376, %s21, [#allocation3], 128, 128, 8
    $region13: #{forward.1} parent=1 // pred_fallthru
      _
    // Predicated region
    $region14: #{forward.1} parent=1 // pred_check
      _
    $region15: #{forward.1} parent=1 // pred_check_branch
      %28 = sbr.rel (0) target = $region17
    $region16: #{forward.1} parent=1 // pred_region
      %30 = dma.done [#allocation3], 5376
    $region17: #{forward.1} parent=1 // pred_fallthru
      _
    %v31 = vld [vmem:[%s0] sm:$0x3]
    %v32 = vld [vmem:[#allocation2] sm:$0xff]
    %v33 = vld [vmem:[#allocation2 + $0x8] sm:$0xff]
    %v34 = vld [vmem:[#allocation2 + $0x10] sm:$0xff]
    %v35 = vld [vmem:[#allocation2 + $0x18] sm:$0xff]
    %v36 = vld [vmem:[#allocation2 + $0x20] sm:$0xff]
    %v37 = vld [vmem:[#allocation2 + $0x28] sm:$0xff]
    %v38 = vld [vmem:[#allocation2 + $0x30] sm:$0xff]
    %v39 = vld [vmem:[#allocation2 + $0x38] sm:$0xff]
    %v40 = vld [vmem:[#allocation2 + $0x40] sm:$0xff]
    %v41 = vld [vmem:[#allocation2 + $0x48] sm:$0xff]
    %v42 = vld [vmem:[#allocation2 + $0x50] sm:$0xff]
    %v43 = vld [vmem:[#allocation2 + $0x58] sm:$0xff]
    %v44 = vld [vmem:[#allocation2 + $0x60] sm:$0xff]
    %v45 = vld [vmem:[#allocation2 + $0x68] sm:$0xff]
    %v46 = vld [vmem:[#allocation2 + $0x70] sm:$0xff]
    %v47 = vld [vmem:[#allocation2 + $0x78] sm:$0xff]
    %v48 = vld [vmem:[#allocation2 + $0x80] sm:$0x1]
    %v49 = vperm.slane %v48, 0
    %50 = vmatpush.msra.mxu0 %v47
    %51 = vmatpush.msra.mxu0 %v46
    %52 = vmatpush.msra.mxu0 %v45
    %53 = vmatpush.msra.mxu0 %v44
    %54 = vmatpush.msra.mxu0 %v43
    %55 = vmatpush.msra.mxu0 %v42
    %56 = vmatpush.msra.mxu0 %v41
    %57 = vmatpush.msra.mxu0 %v40
    %58 = vmatpush.msra.mxu0 %v39
    %59 = vmatpush.msra.mxu0 %v38
    %60 = vmatpush.msra.mxu0 %v37
    %61 = vmatpush.msra.mxu0 %v36
    %62 = vmatpush.msra.mxu0 %v35
    %63 = vmatpush.msra.mxu0 %v34
    %64 = vmatpush.msra.mxu0 %v33
    %65 = vmatpush.msra.mxu0 %v32
    %66 = vmatmul.f32.gmra.mxu0 %v31
    %v67 = vpop.f32.mrf.mxu0
    %v68 = vadd.f32 %v49, %v67
    %69 = vdwg.mxu0
    %v70 = vtanh.pop %v68
    %v71 = vld [vmem:[#allocation2 + $0x88] sm:$0xff]
    %v72 = vld [vmem:[#allocation2 + $0x90] sm:$0xff]
    %v73 = vld [vmem:[#allocation2 + $0x98] sm:$0xff]
    %v74 = vld [vmem:[#allocation2 + $0xa0] sm:$0xff]
    %v75 = vld [vmem:[#allocation2 + $0xa8] sm:$0xff]
    %v76 = vld [vmem:[#allocation2 + $0xb0] sm:$0xff]
    %v77 = vld [vmem:[#allocation2 + $0xb8] sm:$0xff]
    %v78 = vld [vmem:[#allocation2 + $0xc0] sm:$0xff]
    %v79 = vld [vmem:[#allocation2 + $0xc8] sm:$0xff]
    %v80 = vld [vmem:[#allocation2 + $0xd0] sm:$0xff]
    %v81 = vld [vmem:[#allocation2 + $0xd8] sm:$0xff]
    %v82 = vld [vmem:[#allocation2 + $0xe0] sm:$0xff]
    %v83 = vld [vmem:[#allocation2 + $0xe8] sm:$0xff]
    %v84 = vld [vmem:[#allocation2 + $0xf0] sm:$0xff]
    %v85 = vld [vmem:[#allocation2 + $0xf8] sm:$0x1]
    %v86 = vperm.slane %v85, 0
    %vm87 = vcmask 916480
    %v89 = vsel %vm87, %v70, 0
    %91 = vmatpush.msra.mxu0 0.0
    %92 = vmatpush.msra.mxu0 0.0
    %93 = vmatpush.msra.mxu0 %v84
    %94 = vmatpush.msra.mxu0 %v83
    %95 = vmatpush.msra.mxu0 %v82
    %96 = vmatpush.msra.mxu0 %v81
    %97 = vmatpush.msra.mxu0 %v80
    %98 = vmatpush.msra.mxu0 %v79
    %99 = vmatpush.msra.mxu0 %v78
    %100 = vmatpush.msra.mxu0 %v77
    %101 = vmatpush.msra.mxu0 %v76
    %102 = vmatpush.msra.mxu0 %v75
    %103 = vmatpush.msra.mxu0 %v74
    %104 = vmatpush.msra.mxu0 %v73
    %105 = vmatpush.msra.mxu0 %v72
    %106 = vmatpush.msra.mxu0 %v71
    %107 = vmatmul.f32.gmra.mxu0 %v89
    %v108 = vpop.f32.mrf.mxu0
    %v109 = vadd.f32 %v86, %v108
    %110 = vdwg.mxu0
    %v111 = vtanh.pop %v109
    %v112 = vld [vmem:[#allocation2 + $0x100] sm:$0xff]
    %v113 = vld [vmem:[#allocation2 + $0x108] sm:$0xf]
    %v114 = vld [vmem:[#allocation2 + $0x110] sm:$0x1]
    %v115 = vperm.slane %v114, 0
    %vm116 = vcmask 97280
    %v118 = vsel %vm116, %v111, 0
    %vm120 = vcmask 1043456
    %v122 = vsel %vm120, %v113, 0
    %124 = vmatpush.msra.mxu0 0.0
    %125 = vmatpush.msra.mxu0 0.0
    %126 = vmatpush.msra.mxu0 0.0
    %127 = vmatpush.msra.mxu0 0.0
    %128 = vmatpush.msra.mxu0 0.0
    %129 = vmatpush.msra.mxu0 0.0
    %130 = vmatpush.msra.mxu0 0.0
    %131 = vmatpush.msra.mxu0 0.0
    %132 = vmatpush.msra.mxu0 0.0
    %133 = vmatpush.msra.mxu0 0.0
    %134 = vmatpush.msra.mxu0 0.0
    %135 = vmatpush.msra.mxu0 0.0
    %136 = vmatpush.msra.mxu0 0.0
    %137 = vmatpush.msra.mxu0 0.0
    %138 = vmatpush.msra.mxu0 %v122
    %139 = vmatpush.msra.mxu0 %v112
    %140 = vmatmul.f32.gmra.mxu0 %v118
    %v141 = vpop.f32.mrf.mxu0
    %v142 = vadd.f32 %v115, %v141
    %143 = vdwg.mxu0
    %v144 = vperm.slane %v142, 0
    %146 = vrot.lane.b32.xlu0 %v144, 116
    %v147 = vpop.permute.xlu0 %146
    %v149 = vmul.f32 %v142, %v147
    %v150 = vperm.slane %v142, 1
    %152 = vrot.lane.b32.xlu0 %v150, 116
    %v153 = vpop.permute.xlu0 %152
    %v155 = vmul.f32 %v142, %v153
    %v157 = vrot.slane %v155, 6
    %vm159 = vcmask 1041408
    %v160 = vsel %vm159, %v149, %v157
    %v161 = vld [vmem:[#allocation2 + $0x118] sm:$0xff]
    %v162 = vld [vmem:[#allocation2 + $0x120] sm:$0xf]
    %v164 = vsel %vm116, %v160, 0
    %v167 = vsel %vm120, %v162, 0
    %169 = vmatpush.msra.mxu0 0.0
    %170 = vmatpush.msra.mxu0 0.0
    %171 = vmatpush.msra.mxu0 0.0
    %172 = vmatpush.msra.mxu0 0.0
    %173 = vmatpush.msra.mxu0 0.0
    %174 = vmatpush.msra.mxu0 0.0
    %175 = vmatpush.msra.mxu0 0.0
    %176 = vmatpush.msra.mxu0 0.0
    %177 = vmatpush.msra.mxu0 0.0
    %178 = vmatpush.msra.mxu0 0.0
    %179 = vmatpush.msra.mxu0 0.0
    %180 = vmatpush.msra.mxu0 0.0
    %181 = vmatpush.msra.mxu0 0.0
    %182 = vmatpush.msra.mxu0 0.0
    %183 = vmatpush.msra.mxu0 %v167
    %184 = vmatpush.msra.mxu0 %v161
    %185 = vmatmul.f32.gmra.mxu0 %v164
    %v186 = vpop.f32.mrf.mxu0
    %v187 = vadd.f32 0.0, %v186
    %188 = vdwg.mxu0
    %v190 = vrot.slane %v187, 2
    %v192 = vmax.f32 %v187, %v190
    %v193 = vsub.f32 %v187, %v192
    %v194 = vmul.f32 %v193, 1.442695
    %v195 = vpow.pop %v194
    %v197 = vrot.slane %v192, 6
    %v199 = vsub.f32 %v187, %v197
    %v200 = vmul.f32 %v199, 1.442695
    %v201 = vpow.pop %v200
    %v203 = vrot.slane %v201, 2
    %v205 = vadd.f32 %v195, %v203
    %v206 = vrcp.pop %v205
    %v207 = vmul.f32 %v205, %v206
    %v208 = vsub.f32 1.0, %v207
    %v209 = vmul.f32 %v206, %v208
    %v210 = vadd.f32 %v206, %v209
    %vm211 = vweird.f32 %v205
    %vm212 = vweird.f32 %v206
    %vm213 = vmor %vm211, %vm212
    %v214 = vsel %vm213, %v206, %v210
    %v215 = vand.u32 2147483647, %v205
    %vm216 = vcmp.eq.f32.partialorder %v215, 8.507059e+37
    %v217 = vand.u32 %v205, 2147483648
    %v218 = vor.u32 1.1754944e-38, %v217
    %v219 = vsel %vm216, %v218, %v214
    %v220 = vmul.f32 %v195, %v219
    %v222 = vrot.slane %v205, 6
    %v224 = vrcp.pop %v222
    %v225 = vmul.f32 %v222, %v224
    %v226 = vsub.f32 1.0, %v225
    %v227 = vmul.f32 %v224, %v226
    %v228 = vadd.f32 %v224, %v227
    %vm229 = vweird.f32 %v222
    %vm230 = vweird.f32 %v224
    %vm231 = vmor %vm229, %vm230
    %v232 = vsel %vm231, %v224, %v228
    %v233 = vand.u32 2147483647, %v222
    %vm234 = vcmp.eq.f32.partialorder %v233, 8.507059e+37
    %v235 = vand.u32 %v222, 2147483648
    %v236 = vor.u32 1.1754944e-38, %v235
    %v237 = vsel %vm234, %v236, %v232
    %v238 = vmul.f32 %v201, %v237
    %v239 = vsel %vm159, %v220, %v238
    %v240 = vld [vmem:[#allocation2 + $0x128] sm:$0x7]
    %vm241 = vcmask 23552
    %v243 = vsel %vm241, %v239, 0
    %vm245 = vcmask 1042432
    %v247 = vsel %vm245, %v240, 0
    %249 = vmatpush.msra.mxu0 0.0
    %250 = vmatpush.msra.mxu0 0.0
    %251 = vmatpush.msra.mxu0 0.0
    %252 = vmatpush.msra.mxu0 0.0
    %253 = vmatpush.msra.mxu0 0.0
    %254 = vmatpush.msra.mxu0 0.0
    %255 = vmatpush.msra.mxu0 0.0
    %256 = vmatpush.msra.mxu0 0.0
    %257 = vmatpush.msra.mxu0 0.0
    %258 = vmatpush.msra.mxu0 0.0
    %259 = vmatpush.msra.mxu0 0.0
    %260 = vmatpush.msra.mxu0 0.0
    %261 = vmatpush.msra.mxu0 0.0
    %262 = vmatpush.msra.mxu0 0.0
    %263 = vmatpush.msra.mxu0 0.0
    %264 = vmatpush.msra.mxu0 %v247
    %265 = vmatmul.f32.gmra.mxu0 %v243
    %v266 = vpop.f32.mrf.mxu0
    %v267 = vadd.f32 0.0, %v266
    %268 = vdwg.mxu0
    %269 = vrot.lane.b32.xlu0 %v144, 104
    %v270 = vpop.permute.xlu0 %269
    %v272 = vmul.f32 %v267, %v270
    %273 = vrot.lane.b32.xlu0 %v150, 104
    %v274 = vpop.permute.xlu0 %273
    %v276 = vmul.f32 %v267, %v274
    %v278 = vrot.slane %v276, 2
    %v280 = vadd.f32 %v272, %v278
    %v281 = vld [vmem:[#allocation2 + $0x130] sm:$0xff]
    %v282 = vld [vmem:[#allocation2 + $0x138] sm:$0xf]
    %v283 = vld [vmem:[%s1] sm:$0x3]
    %v284 = vld [vmem:[#allocation2 + $0x140] sm:$0x3f]
    %vm285 = vcmask 48128
    %v287 = vsel %vm285, %v283, 0
    %vm289 = vcmask 1045504
    %v291 = vsel %vm289, %v284, 0
    %293 = vmatpush.msra.mxu0 0.0
    %294 = vmatpush.msra.mxu0 0.0
    %295 = vmatpush.msra.mxu0 0.0
    %296 = vmatpush.msra.mxu0 0.0
    %297 = vmatpush.msra.mxu0 0.0
    %298 = vmatpush.msra.mxu0 0.0
    %299 = vmatpush.msra.mxu0 0.0
    %300 = vmatpush.msra.mxu0 0.0
    %301 = vmatpush.msra.mxu0 0.0
    %302 = vmatpush.msra.mxu0 0.0
    %303 = vmatpush.msra.mxu0 0.0
    %304 = vmatpush.msra.mxu0 0.0
    %305 = vmatpush.msra.mxu0 0.0
    %306 = vmatpush.msra.mxu0 0.0
    %307 = vmatpush.msra.mxu0 0.0
    %308 = vmatpush.msra.mxu0 %v291
    %309 = vmatmul.f32.gmra.mxu0 %v287
    %v310 = vpop.f32.mrf.mxu0
    %v311 = vadd.f32 0.0, %v310
    %312 = vdwg.mxu0
    %v314 = vsel %vm116, %v280, 0
    %v317 = vsel %vm120, %v282, 0
    %319 = vmatpush.msra.mxu0 0.0
    %320 = vmatpush.msra.mxu0 0.0
    %321 = vmatpush.msra.mxu0 0.0
    %322 = vmatpush.msra.mxu0 0.0
    %323 = vmatpush.msra.mxu0 0.0
    %324 = vmatpush.msra.mxu0 0.0
    %325 = vmatpush.msra.mxu0 0.0
    %326 = vmatpush.msra.mxu0 0.0
    %327 = vmatpush.msra.mxu0 0.0
    %328 = vmatpush.msra.mxu0 0.0
    %329 = vmatpush.msra.mxu0 0.0
    %330 = vmatpush.msra.mxu0 0.0
    %331 = vmatpush.msra.mxu0 0.0
    %332 = vmatpush.msra.mxu0 0.0
    %333 = vmatpush.msra.mxu0 %v317
    %334 = vmatpush.msra.mxu0 %v281
    %335 = vmatmul.f32.gmra.mxu0 %v314
    %v336 = vpop.f32.mrf.mxu0
    %v337 = vadd.f32 %v311, %v336
    %338 = vdwg.mxu0
    %v339 = vld [vmem:[#allocation2 + $0x148] sm:$0x1]
    %v340 = vperm.slane %v339, 0
    %v341 = vadd.f32 %v337, %v340
    %vm342 = vcmask 33792
    %v343 = vsel %vm342, %v341, -inf
    %344 = vmax.xlane.f32.xlu0 %v343
    %v345 = vpop.xlane.xlu0 %344
    %v346 = vsub.f32 %v341, %v345
    %v347 = vmul.f32 %v346, 1.442695
    %v348 = vpow.pop %v347
    %v349 = vsel %vm342, %v348, 0.0
    %350 = vadd.xlane.f32.xlu0 %v349
    %v351 = vpop.xlane.xlu0 %350
    %v352 = vrcp.pop %v351
    %v353 = vmul.f32 %v351, %v352
    %v354 = vsub.f32 1.0, %v353
    %v355 = vmul.f32 %v352, %v354
    %v356 = vadd.f32 %v352, %v355
    %vm357 = vweird.f32 %v351
    %vm358 = vweird.f32 %v352
    %vm359 = vmor %vm357, %vm358
    %v360 = vsel %vm359, %v352, %v356
    %v361 = vand.u32 2147483647, %v351
    %vm362 = vcmp.eq.f32.partialorder %v361, 8.507059e+37
    %v363 = vand.u32 %v351, 2147483648
    %v364 = vor.u32 1.1754944e-38, %v363
    %v365 = vsel %vm362, %v364, %v360
    %v366 = vmul.f32 %v348, %v365
    %367 = vst.msk [vmem:[#allocation5] sm:$0x3] %vm342, %v366
    // Predicated region
    $region18: #{forward.1} parent=1 // pred_check
      _
    $region19: #{forward.1} parent=1 // pred_check_branch
      %369 = sbr.rel (0) target = $region21
    $region20: #{forward.1} parent=1 // pred_region
      %371 = vsyncadd [#allocation4], 0
      %s373 = sshll.u32 [#allocation5], 4
      %s374 = int_to_ptr.vmem [resolvable:$true] %s373
      %s375 = sshll.u32 %s3, 4
      %s376 = int_to_ptr.hbm [resolvable:$true] %s375
      %378 = dma.vmem_to_hbm [thread:$0]  %s374, 32, %s376, [#allocation4]
    $region21: #{forward.1} parent=1 // pred_fallthru
      _
    // Predicated region
    $region22: #{forward.1} parent=1 // pred_check
      _
    $region23: #{forward.1} parent=1 // pred_check_branch
      %380 = sbr.rel (0) target = $region25
    $region24: #{forward.1} parent=1 // pred_region
      %382 = dma.done [#allocation4], 32
    $region25: #{forward.1} parent=1 // pred_fallthru
      _
    %383 = vsyncpa [#allocation3], 1
    %384 = vsyncpa [#allocation4], 1

</llo_original>
